<compile_context>
chip_gen: v7x
topology: tpu7x:2x2x1
jax: 0.10.0
libtpu: 0.0.40
codegen_flags: <defaults>
</compile_context>

<pallas_src>
import functools

import jax
import jax.numpy as jnp
from jax import lax
from jax.experimental import pallas as pl
from jax.experimental.pallas import tpu as pltpu

_EPS = 1e-8  # matches torch.nn.functional.cosine_similarity default eps


def _cosine_attn_kernel(x_ref, p_ref, pscale_ref, o_ref, *, cos_dtype):
    # x_ref:      (Bb, Tt, D)  decoder outputs                     (input dtype)
    # p_ref:      (Bb, N,  D)  speaker profiles                    (input dtype)
    # pscale_ref: (Bb, N,  1)  f32: valid_mask / ||p||  (0 for padded profile slots)
    # o_ref:      (Bb, Tt, D)  output speaker embeddings
    x = x_ref[...]
    p = p_ref[...]
    pscale = pscale_ref[...]                                     # (Bb, N, 1) f32

    # ---- decoder-row norms in f32 (lane reduce + EUP rsqrt); MXU operand in
    #      cos_dtype (bf16 when the input is f32) ----
    xf = x.astype(jnp.float32)
    x_inv = lax.rsqrt(jnp.maximum(jnp.sum(xf * xf, axis=-1, keepdims=True),
                                  _EPS * _EPS))                  # (Bb, Tt, 1)
    xn = (xf * x_inv).astype(cos_dtype)                          # unit rows
    pc = p.astype(cos_dtype)

    # ---- lane-dense similarity: Tt on lanes, N on sublanes.  The profile
    #      normalization is folded into pscale *after* the matmul, so the
    #      profile block never gets re-normalized per T tile. ----
    raw = jnp.einsum('bnd,btd->bnt', pc, xn,
                     preferred_element_type=jnp.float32)         # (Bb, N, Tt) f32
    # cosine + padding mask in one broadcasted multiply (reference: masked slots
    # keep logit 0.0, they still participate in the softmax)
    logits = raw * pscale                                        # (Bb, N, Tt)

    # ---- softmax over N (sublane axis); logits in [-1, 1] so no max-subtract ----
    e = jnp.exp(logits)
    inv = pl.reciprocal(jnp.sum(e, axis=1, keepdims=True), approx=True)  # (Bb,1,Tt)
    w = (e * inv).astype(p.dtype)                                # (Bb, N, Tt)

    # ---- weighted sum of (unnormalized) profiles; f32 accumulation ----
    o_ref[...] = jnp.einsum('bnt,bnd->btd', w, p,
                            preferred_element_type=jnp.float32).astype(o_ref.dtype)


def cosine_distance_attention(spk_decoder_out, profile, profile_lens=None,
                              *, cosine_in_bf16=True, vmem_limit_bytes=None):
    """Pallas equivalent of CosineDistanceAttention.forward."""
    B, T, D = spk_decoder_out.shape
    _, N, _ = profile.shape
    in_dtype = spk_decoder_out.dtype

    if profile_lens is None:
        # PyTorch path: x = x[:, -1:, :, :] -> only the last decoder step,
        # and all N profile slots are treated as valid.
        x = spk_decoder_out[:, -1:, :]
        valid = jnp.ones((B, N, 1), jnp.float32)
    else:
        x = spk_decoder_out
        valid = (jnp.arange(N, dtype=jnp.int32)[None, :, None]
                 < profile_lens.astype(jnp.int32)[:, None, None]).astype(jnp.float32)

    Tx = x.shape[1]

    # ---- profile normalization hoisted out of the T loop (tiny: N*D << T*D).
    #      Note: per-norm eps clamp (matches current F.cosine_similarity); differs
    #      from a product clamp only for degenerate near-zero rows. ----
    pf = profile.astype(jnp.float32)
    p_inv = lax.rsqrt(jnp.maximum(jnp.sum(pf * pf, axis=-1, keepdims=True),
                                  _EPS * _EPS))                  # (B, N, 1)
    pscale = p_inv * valid                                       # 0 for padded slots

    # ---- generation-aware VMEM budget (v7x has 64 MiB VMEM vs 128 on v5e/v6e) ----
    vmem_cap = 64 * 1024 * 1024          # conservative default = v7x per-core VMEM
    try:
        cap = getattr(pltpu.get_tpu_info(), "vmem_capacity_bytes", None)
        if cap:
            vmem_cap = int(cap)
    except Exception:
        pass
    if vmem_limit_bytes is None:
        vmem_limit_bytes = min(vmem_cap // 2, 96 * 1024 * 1024)
    target = vmem_limit_bytes // 2       # leave half the scoped limit as headroom

    cos_dtype = (jnp.bfloat16
                 if (cosine_in_bf16 and in_dtype == jnp.float32) else in_dtype)
    in_item = jnp.dtype(in_dtype).itemsize          # honest itemsize (bf16 != f32)
    cos_item = jnp.dtype(cos_dtype).itemsize

    def _row_bytes(tt):
        # double-buffered DMA tiles (x, out, p, pscale) + in-kernel f32 intermediates
        dma = 2 * (tt * D * in_item + tt * D * in_item + N * D * in_item + N * 4)
        interm = (tt * D * 4            # xf / x*x in f32
                  + tt * D * cos_item   # xn MXU operand
                  + tt * 4              # x_inv
                  + 3 * N * tt * 4)     # raw/e/w in the lane-dense (N, Tt) layout
        return dma + interm

    # T tile: full T when it fits, else halve in multiples of 8 until it does.
    Tt = Tx if Tx <= 1024 else 512
    while Tt > 8 and _row_bytes(Tt) > target:
        Tt = max(8, ((Tt // 2) + 7) // 8 * 8)

    # Batch block: amortize the ~0.35 us/grid-step overhead within the budget.
    Bb = int(max(1, min(B, target // max(_row_bytes(Tt), 1))))
    nt = pl.cdiv(Tx, Tt)
    nb = pl.cdiv(B, Bb)
    # v7x has 2 TensorCores: make sure there are >= 2 grid steps on a parallel axis.
    if nb * nt < 2 and B > 1:
        Bb = (B + 1) // 2
        nb = pl.cdiv(B, Bb)

    T_pad = nt * Tt
    B_pad = nb * Bb

    # Pad to whole blocks (padded rows are zeros -> clamped norms -> finite, sliced off).
    if T_pad != Tx:
        x = jnp.pad(x, ((0, 0), (0, T_pad - Tx), (0, 0)))
    if B_pad != B:
        x = jnp.pad(x, ((0, B_pad - B), (0, 0), (0, 0)))
        profile_in = jnp.pad(profile, ((0, B_pad - B), (0, 0), (0, 0)))
        pscale = jnp.pad(pscale, ((0, B_pad - B), (0, 0), (0, 0)))
    else:
        profile_in = profile

    kernel = functools.partial(_cosine_attn_kernel, cos_dtype=cos_dtype)

    out = pl.pallas_call(
        kernel,
        out_shape=jax.ShapeDtypeStruct((B_pad, T_pad, D), in_dtype),
        grid_spec=pltpu.PrefetchScalarGridSpec(
            num_scalar_prefetch=0,
            grid=(nb, nt),
            in_specs=[
                pl.BlockSpec((Bb, Tt, D), lambda b, t: (b, t, 0)),
                # profile / pscale block indices are t-invariant -> fetched once per b
                pl.BlockSpec((Bb, N, D), lambda b, t: (b, 0, 0)),
                pl.BlockSpec((Bb, N, 1), lambda b, t: (b, 0, 0)),
            ],
            out_specs=pl.BlockSpec((Bb, Tt, D), lambda b, t: (b, t, 0)),
        ),
        compiler_params=pltpu.CompilerParams(
            dimension_semantics=("parallel", "parallel"),
            vmem_limit_bytes=int(vmem_limit_bytes)),
    )(x, profile_in, pscale)

    if B_pad != B or T_pad != Tx:
        out = out[:B, :Tx, :]
    return out


def _reference(spk_decoder_out, profile, profile_lens=None):
    """Pure-JAX reference mirroring the PyTorch module exactly."""
    if profile_lens is None:
        x = spk_decoder_out[:, -1:, None, :]                      # (B, 1, 1, D)
    else:
        x = spk_decoder_out[:, :, None, :]                        # (B, T, 1, D)
    p = profile[:, None, :, :]                                    # (B, 1, N, D)
    w12 = jnp.sum(x * p, axis=-1)
    w1 = jnp.sum(x * x, axis=-1)
    w2 = jnp.sum(p * p, axis=-1)
    cos = w12 / jnp.sqrt(jnp.maximum(w1 * w2, _EPS * _EPS))       # (B, T, N)
    if profile_lens is not None:
        N = profile.shape[1]
        m = (jnp.arange(N)[None, :] < profile_lens[:, None]).astype(cos.dtype)
        cos = cos * m[:, None, :]
    w = jax.nn.softmax(cos, axis=-1)
    return jnp.matmul(w, profile)


if __name__ == "__main__":
    key = jax.random.PRNGKey(0)
    k1, k2 = jax.random.split(key)

    B, T, N, D = 2, 8, 6, 32
    spk_decoder_out = jax.random.normal(k1, (B, T, D), dtype=jnp.float32)
    profile = jax.random.normal(k2, (B, N, D), dtype=jnp.float32)
    profile_lens = jnp.array([6, 4], dtype=jnp.int32)

    # Path 1: with profile_lens, default fast path (bf16 cosine logits on the MXU).
    out_masked = jax.block_until_ready(
        cosine_distance_attention(spk_decoder_out, profile, profile_lens))
    ref_masked = _reference(spk_decoder_out, profile, profile_lens)

    # Path 2: with profile_lens, full-f32 cosine (tighter numerical parity).
    out_masked_f32 = jax.block_until_ready(
        cosine_distance_attention(spk_decoder_out, profile, profile_lens,
                                  cosine_in_bf16=False))

    # Path 3: without profile_lens (last decoder step only).
    out_last = jax.block_until_ready(
        cosine_distance_attention(spk_decoder_out, profile, None))
    ref_last = _reference(spk_decoder_out, profile, None)

    assert out_masked.shape == (B, T, D)
    assert out_last.shape == (B, 1, D)
    # bf16 cosine logits (feeding a softmax) + approx-EUP reciprocal.
    assert jnp.allclose(out_masked, ref_masked, atol=1e-2, rtol=1e-2), \
        float(jnp.max(jnp.abs(out_masked - ref_masked)))
    # f32 cosine path: only the approx reciprocal and the rsqrt-normalized
    # formulation differ from the product-clamped reference.
    assert jnp.allclose(out_masked_f32, ref_masked, atol=2e-3, rtol=2e-3), \
        float(jnp.max(jnp.abs(out_masked_f32 - ref_masked)))
    assert jnp.allclose(out_last, ref_last, atol=1e-2, rtol=1e-2), \
        float(jnp.max(jnp.abs(out_last - ref_last)))

    print("KERNEL_OK")
</pallas_src>

<mosaic_0001>
module attributes {stable_mosaic.version = 11 : i64} {
  func.func @_cosine_attn_kernel(%arg0: i32, %arg1: i32, %arg2: memref<1x8x32xf32, #tpu.memory_space<vmem>>, %arg3: memref<1x6x32xf32, #tpu.memory_space<vmem>>, %arg4: memref<1x6x1xf32, #tpu.memory_space<vmem>>, %arg5: memref<1x8x32xf32, #tpu.memory_space<vmem>>) attributes {dimension_semantics = [#tpu.dimension_semantics<parallel>, #tpu.dimension_semantics<parallel>], iteration_bounds = array<i64: 2, 1>, scalar_prefetch = 0 : i64, scratch_operands = 0 : i64, tpu.core_type = #tpu.core_type<tc>, window_params = [{transform_indices = @transform_0, window_bounds = array<i64: 1, 8, 32>}, {transform_indices = @transform_1, window_bounds = array<i64: 1, 6, 32>}, {transform_indices = @transform_2, window_bounds = array<i64: 1, 6, 1>}, {transform_indices = @transform_3, window_bounds = array<i64: 1, 8, 32>}]} {
    %c0 = arith.constant 0 : index
    %c0_0 = arith.constant 0 : index
    %c0_1 = arith.constant 0 : index
    %0 = vector.load %arg2[%c0, %c0_0, %c0_1] : memref<1x8x32xf32, #tpu.memory_space<vmem>>, vector<1x8x32xf32>
    %c0_2 = arith.constant 0 : index
    %c0_3 = arith.constant 0 : index
    %c0_4 = arith.constant 0 : index
    %1 = vector.load %arg3[%c0_2, %c0_3, %c0_4] : memref<1x6x32xf32, #tpu.memory_space<vmem>>, vector<1x6x32xf32>
    %c0_5 = arith.constant 0 : index
    %c0_6 = arith.constant 0 : index
    %c0_7 = arith.constant 0 : index
    %2 = vector.load %arg4[%c0_5, %c0_6, %c0_7] : memref<1x6x1xf32, #tpu.memory_space<vmem>>, vector<1x6x1xf32>
    %3 = arith.mulf %0, %0 : vector<1x8x32xf32>
    %cst = arith.constant dense<0.000000e+00> : vector<1x8xf32>
    %4 = vector.multi_reduction <add>, %3, %cst [2] : vector<1x8x32xf32> to vector<1x8xf32>
    %5 = vector.shape_cast %4 : vector<1x8xf32> to vector<1x8x1xf32>
    %cst_8 = arith.constant 1.000000e-16 : f32
    %6 = vector.broadcast %cst_8 : f32 to vector<1x8x1xf32>
    %7 = arith.maximumf %5, %6 : vector<1x8x1xf32>
    %8 = math.rsqrt %7 : vector<1x8x1xf32>
    %9 = vector.broadcast %8 : vector<1x8x1xf32> to vector<1x8x32xf32>
    %10 = arith.mulf %0, %9 : vector<1x8x32xf32>
    %11 = arith.truncf %10 : vector<1x8x32xf32> to vector<1x8x32xbf16>
    %12 = arith.truncf %1 : vector<1x6x32xf32> to vector<1x6x32xbf16>
    "tpu.trace_start"() <{level = 10 : i32, message = "bnd,btd->bnt"}> : () -> ()
    %cst_9 = arith.constant dense<0.000000e+00> : vector<1x6x8xf32>
    %13 = tpu.matmul %12, %11, %cst_9 {dimension_numbers = #tpu.dot_dimension_numbers<[2], [2], [1], [1], [0, 0, 0, 1, 1, 1], [0], [0]>} : vector<1x6x32xbf16>, vector<1x8x32xbf16>, vector<1x6x8xf32> -> vector<1x6x8xf32>
    "tpu.trace_stop"() : () -> ()
    %14 = vector.broadcast %2 : vector<1x6x1xf32> to vector<1x6x8xf32>
    %15 = arith.mulf %13, %14 : vector<1x6x8xf32>
    %16 = math.exp %15 : vector<1x6x8xf32>
    %cst_10 = arith.constant dense<0.000000e+00> : vector<1x8xf32>
    %17 = vector.multi_reduction <add>, %16, %cst_10 [1] : vector<1x6x8xf32> to vector<1x8xf32>
    %18 = vector.shape_cast %17 : vector<1x8xf32> to vector<1x1x8xf32>
    %19 = tpu.reciprocal %18 {approx = true} : vector<1x1x8xf32> -> vector<1x1x8xf32>
    %20 = vector.broadcast %19 : vector<1x1x8xf32> to vector<1x6x8xf32>
    %21 = arith.mulf %16, %20 : vector<1x6x8xf32>
    "tpu.trace_start"() <{level = 10 : i32, message = "bnt,bnd->btd"}> : () -> ()
    %cst_11 = arith.constant dense<0.000000e+00> : vector<1x8x32xf32>
    %22 = tpu.matmul %21, %1, %cst_11 {dimension_numbers = #tpu.dot_dimension_numbers<[1], [1], [2], [2], [0, 0, 0, 2, 1, 2], [0], [0]>} : vector<1x6x8xf32>, vector<1x6x32xf32>, vector<1x8x32xf32> -> vector<1x8x32xf32>
    "tpu.trace_stop"() : () -> ()
    %c0_12 = arith.constant 0 : index
    %c0_13 = arith.constant 0 : index
    %c0_14 = arith.constant 0 : index
    %23 = vector.load %arg5[%c0_12, %c0_13, %c0_14] : memref<1x8x32xf32, #tpu.memory_space<vmem>>, vector<1x8x32xf32>
    tpu.vector_store %arg5[%c0_12, %c0_13, %c0_14], %22 {strides = array<i32>} : memref<1x8x32xf32, #tpu.memory_space<vmem>>, vector<1x8x32xf32>,
    return
  }
  func.func @transform_0(%arg0: i32, %arg1: i32) -> (i32, i32, i32) {
    %c0_i32 = arith.constant 0 : i32
    %c0_i32_0 = arith.constant 0 : i32
    return %arg0, %arg1, %c0_i32 : i32, i32, i32
  }
  func.func @transform_1(%arg0: i32, %arg1: i32) -> (i32, i32, i32) {
    %c0_i32 = arith.constant 0 : i32
    %c0_i32_0 = arith.constant 0 : i32
    %c0_i32_1 = arith.constant 0 : i32
    return %arg0, %c0_i32, %c0_i32_0 : i32, i32, i32
  }
  func.func @transform_2(%arg0: i32, %arg1: i32) -> (i32, i32, i32) {
    %c0_i32 = arith.constant 0 : i32
    %c0_i32_0 = arith.constant 0 : i32
    %c0_i32_1 = arith.constant 0 : i32
    return %arg0, %c0_i32, %c0_i32_0 : i32, i32, i32
  }
  func.func @transform_3(%arg0: i32, %arg1: i32) -> (i32, i32, i32) {
    %c0_i32 = arith.constant 0 : i32
    %c0_i32_0 = arith.constant 0 : i32
    return %arg0, %arg1, %c0_i32 : i32, i32, i32
  }
}

</mosaic_0001>

<llo_original>
// kernel: tpu_custom_call.1
$region0: #{tpu_custom_call.1}
  #allocation0 [shape = 'u32[]', space=smem, size = 0x4, offset = 0x4, fixed_abs, tag = 'smem constant byte address 0x4 - core index']
  #allocation1 [shape = 'u32[144,128]{1,0:T(1,128)}', space=vmem, size = 0x12000, scoped, tag = 'internal scratch']
  %s0 = inlined_call_operand.vmem [shape: f32[2,8,32], index: 0, kind: input, shape index: {}]
  %s1 = inlined_call_operand.vmem [shape: f32[2,6,32], index: 1, kind: input, shape index: {}]
  %s2 = inlined_call_operand.vmem [shape: f32[2,6,1], index: 2, kind: input, shape index: {}]
  %s3 = inlined_call_operand.hbm [shape: f32[2,8,32], index: 3, kind: output, shape index: {}]
  %s4 = sld [smem:[#allocation0]]
  $region45: #{tpu_custom_call.1} parent=0
    _
  %s6 = ssub.s32 1, %s4
  %s7 = scalar_select 0, %s6, %s4
  $region1: #{tpu_custom_call.1} parent=0
    #allocation2 [shape = 'u8[8192]{0}', space=vmem, size = 0x2000, scoped, tag = 'output window, operand 0']
    #allocation3 [shape = 's32[2]{0}', space=sflag, size = 0x8, scoped, tag = 'scoped memory for tpu_custom_call.1']
    %8 = vsyncpa [#allocation3], 0
    %s9 = scalar_lea.sflag [#allocation3], 1
    %10 = vsyncpa %s9, 0
    loop: start=0, step=1, limit=4
    $region2: #{tpu_custom_call.1} parent=1 // loop_pre_header
      _
    $region3: #{tpu_custom_call.1} parent=1 // loop_header
      %s12 = sphi 0, %s16
      %p13 = scmp.ge.s32.totalorder %s12, 4
      %s19 = sphi 0, %s31
      %s20 = sphi 0, %s27
      %s21 = sphi 0, %s19
      %s22 = sphi 0, %s20
      %s23 = sphi 0, %s21
      %s24 = sphi 0, %s22
      %s36 = sphi 0, %s38
      %s39 = sphi 0, %s36
      %s40 = sphi 0, %s39
      %s56 = sphi 0, %s40
      %s62 = sphi 0, %s64
      %s65 = sphi 0, %s62
      %s66 = sphi 0, %s65
      %s82 = sphi 0, %s66
      %s88 = sphi 0, %s90
      %s91 = sphi 0, %s88
      %s92 = sphi 0, %s91
      %s108 = sphi 0, %s92
      %s116 = sphi 0, %s118
      %s119 = sphi 0, %s116
      %s120 = sphi 0, %s119
      %s136 = sphi 0, %s120
    $region4: #{tpu_custom_call.1} parent=1 // loop_header_branch
      %15 = sbr.rel (%p13) target = $region8
    $region5: #{tpu_custom_call.1} parent=1 // loop_body
      %s17 = ssub.s32 %s12, 1
      %s18 = ssub.s32 %s12, 2
      %s25 = sadd.s32 1, %s20
      %p26 = scmp.ge.s32.totalorder %s25, 1
      %s27 = scalar_select %p26, 0, %s25
      %s28 = sadd.s32 1, %s19
      %s29 = scalar_select %p26, %s28, %s19
      %p30 = scmp.ge.s32.totalorder %s29, 2
      %s31 = scalar_select %p30, 0, %s29
      %s32 = ssub.s32 %s19, %s31
      %s33 = ssub.s32 %s20, %s27
      %s34 = sor.u32 %s32, %s33
      %p35 = scmp.eq.s32.totalorder %s34, 0
      %s37 = sadd.s32 %s36, 1
      %s38 = scalar_select %p35, %s36, %s37
      %p41 = pneg %p35
      %p42 = scmp.eq.s32.totalorder %s12, 1
      %p43 = por %p41, %p42
      %p44 = scmp.ne.s32.totalorder %s36, %s39
      %p45 = scmp.eq.s32.totalorder %s12, 0
      %p46 = por %p44, %p45
      %p47 = scmp.ne.s32.totalorder %s36, %s39
      %p48 = scmp.eq.s32.totalorder %s17, 1
      %p49 = por %p47, %p48
      %p50 = scmp.ne.s32.totalorder %s39, %s40
      %p51 = scmp.eq.s32.totalorder %s17, 0
      %p52 = por %p50, %p51
      %p53 = scmp.ne.s32.totalorder %s39, %s40
      %p54 = scmp.eq.s32.totalorder %s18, 1
      %p55 = por %p53, %p54
      %p57 = scmp.ne.s32.totalorder %s40, %s56
      %p58 = scmp.eq.s32.totalorder %s18, 0
      %p59 = por %p57, %p58
      %s60 = ssub.s32 %s19, %s31
      %p61 = scmp.eq.s32.totalorder %s60, 0
      %s63 = sadd.s32 %s62, 1
      %s64 = scalar_select %p61, %s62, %s63
      %p67 = pneg %p61
      %p68 = scmp.eq.s32.totalorder %s12, 1
      %p69 = por %p67, %p68
      %p70 = scmp.ne.s32.totalorder %s62, %s65
      %p71 = scmp.eq.s32.totalorder %s12, 0
      %p72 = por %p70, %p71
      %p73 = scmp.ne.s32.totalorder %s62, %s65
      %p74 = scmp.eq.s32.totalorder %s17, 1
      %p75 = por %p73, %p74
      %p76 = scmp.ne.s32.totalorder %s65, %s66
      %p77 = scmp.eq.s32.totalorder %s17, 0
      %p78 = por %p76, %p77
      %p79 = scmp.ne.s32.totalorder %s65, %s66
      %p80 = scmp.eq.s32.totalorder %s18, 1
      %p81 = por %p79, %p80
      %p83 = scmp.ne.s32.totalorder %s66, %s82
      %p84 = scmp.eq.s32.totalorder %s18, 0
      %p85 = por %p83, %p84
      %s86 = ssub.s32 %s19, %s31
      %p87 = scmp.eq.s32.totalorder %s86, 0
      %s89 = sadd.s32 %s88, 1
      %s90 = scalar_select %p87, %s88, %s89
      %p93 = pneg %p87
      %p94 = scmp.eq.s32.totalorder %s12, 1
      %p95 = por %p93, %p94
      %p96 = scmp.ne.s32.totalorder %s88, %s91
      %p97 = scmp.eq.s32.totalorder %s12, 0
      %p98 = por %p96, %p97
      %p99 = scmp.ne.s32.totalorder %s88, %s91
      %p100 = scmp.eq.s32.totalorder %s17, 1
      %p101 = por %p99, %p100
      %p102 = scmp.ne.s32.totalorder %s91, %s92
      %p103 = scmp.eq.s32.totalorder %s17, 0
      %p104 = por %p102, %p103
      %p105 = scmp.ne.s32.totalorder %s91, %s92
      %p106 = scmp.eq.s32.totalorder %s18, 1
      %p107 = por %p105, %p106
      %p109 = scmp.ne.s32.totalorder %s92, %s108
      %p110 = scmp.eq.s32.totalorder %s18, 0
      %p111 = por %p109, %p110
      %s112 = ssub.s32 %s19, %s31
      %s113 = ssub.s32 %s20, %s27
      %s114 = sor.u32 %s112, %s113
      %p115 = scmp.eq.s32.totalorder %s114, 0
      %s117 = sadd.s32 %s116, 1
      %s118 = scalar_select %p115, %s116, %s117
      %p121 = pneg %p115
      %p122 = scmp.eq.s32.totalorder %s12, 1
      %p123 = por %p121, %p122
      %p124 = scmp.ne.s32.totalorder %s116, %s119
      %p125 = scmp.eq.s32.totalorder %s12, 0
      %p126 = por %p124, %p125
      %p127 = scmp.ne.s32.totalorder %s116, %s119
      %p128 = scmp.eq.s32.totalorder %s17, 1
      %p129 = por %p127, %p128
      %p130 = scmp.ne.s32.totalorder %s119, %s120
      %p131 = scmp.eq.s32.totalorder %s17, 0
      %p132 = por %p130, %p131
      %p133 = scmp.ne.s32.totalorder %s119, %s120
      %p134 = scmp.eq.s32.totalorder %s18, 1
      %p135 = por %p133, %p134
      %p137 = scmp.ne.s32.totalorder %s120, %s136
      %p138 = scmp.eq.s32.totalorder %s18, 0
      %p139 = por %p137, %p138
      %p140 = scmp.le.s32.totalorder 1, %s12
      %p141 = scmp.lt.s32.totalorder %s12, 3
      %p142 = pnand %p140, %p141
      %p143 = pneg %p142
      // Predicated region
      $region9: #{tpu_custom_call.1} parent=5 // pred_check
        _
      $region10: #{tpu_custom_call.1} parent=5 // pred_check_branch
        %145 = sbr.rel (%p142) target = $region12
      $region11: #{tpu_custom_call.1} parent=5 // pred_region
        %s146 = ssub.s32 %s12, 1
      $region12: #{tpu_custom_call.1} parent=5 // pred_fallthru
        _
      %p147 = scmp.lt.s32.totalorder %s12, 2
      // Predicated region
      $region13: #{tpu_custom_call.1} parent=5 // pred_check
        %p148 = pneg %p147
      $region14: #{tpu_custom_call.1} parent=5 // pred_check_branch
        %150 = sbr.rel (%p148) target = $region16
      $region15: #{tpu_custom_call.1} parent=5 // pred_region
        // Predicated region
        $region17: #{tpu_custom_call.1} parent=15 // pred_check
          %p151 = pneg %p46
        $region18: #{tpu_custom_call.1} parent=15 // pred_check_branch
          %153 = sbr.rel (%p151) target = $region20
        $region19: #{tpu_custom_call.1} parent=15 // pred_region
          %p154 = scmp.lt.s32.totalorder %s19, 1
          %s155 = scalar_select %p154, %s19, 1
          %p156 = scmp.lt.s32.totalorder %s20, 0
          %s157 = scalar_select %p156, %s20, 0
          %s158 = sadd.s32 %s157, %s155
          %s159 = smul.addr %s158, 8
          %s160 = scalar_lea.vmem %s0, %s159
        $region20: #{tpu_custom_call.1} parent=15 // pred_fallthru
          _
        // Predicated region
        $region21: #{tpu_custom_call.1} parent=15 // pred_check
          %p161 = pneg %p72
        $region22: #{tpu_custom_call.1} parent=15 // pred_check_branch
          %163 = sbr.rel (%p161) target = $region24
        $region23: #{tpu_custom_call.1} parent=15 // pred_region
          %p164 = scmp.lt.s32.totalorder %s19, 1
          %s165 = scalar_select %p164, %s19, 1
          %s166 = smul.addr %s165, 8
          %s167 = scalar_lea.vmem %s1, %s166
        $region24: #{tpu_custom_call.1} parent=15 // pred_fallthru
          _
        // Predicated region
        $region25: #{tpu_custom_call.1} parent=15 // pred_check
          %p168 = pneg %p98
        $region26: #{tpu_custom_call.1} parent=15 // pred_check_branch
          %170 = sbr.rel (%p168) target = $region28
        $region27: #{tpu_custom_call.1} parent=15 // pred_region
          %p171 = scmp.lt.s32.totalorder %s19, 1
          %s172 = scalar_select %p171, %s19, 1
          %s173 = smul.addr %s172, 8
          %s174 = scalar_lea.vmem %s2, %s173
        $region28: #{tpu_custom_call.1} parent=15 // pred_fallthru
          _
      $region16: #{tpu_custom_call.1} parent=5 // pred_fallthru
        _
      %p175 = scmp.le.s32.totalorder 1, %s12
      %p176 = scmp.lt.s32.totalorder %s12, 3
      %p177 = pnand %p175, %p176
      %p178 = pneg %p177
      // Predicated region
      $region29: #{tpu_custom_call.1} parent=5 // pred_check
        _
      $region30: #{tpu_custom_call.1} parent=5 // pred_check_branch
        %180 = sbr.rel (%p177) target = $region32
      $region31: #{tpu_custom_call.1} parent=5 // pred_region
        %s181 = ssub.s32 %s12, 1
        %p182 = scmp.lt.s32.totalorder %s21, 1
        %s183 = scalar_select %p182, %s21, 1
        %p184 = scmp.lt.s32.totalorder %s22, 0
        %s185 = scalar_select %p184, %s22, 0
        %s186 = sadd.s32 %s185, %s183
        %s187 = smul.addr %s186, 8
        %s188 = scalar_lea.vmem %s0, %s187
        %p189 = pneg %p52
        %p190 = pneg %p49
        %p191 = scmp.lt.s32.totalorder %s21, 1
        %s192 = scalar_select %p191, %s21, 1
        %s193 = smul.addr %s192, 8
        %s194 = scalar_lea.vmem %s1, %s193
        %p195 = pneg %p78
        %p196 = pneg %p75
        %p197 = scmp.lt.s32.totalorder %s21, 1
        %s198 = scalar_select %p197, %s21, 1
        %s199 = smul.addr %s198, 8
        %s200 = scalar_lea.vmem %s2, %s199
        %p201 = pneg %p104
        %p202 = pneg %p101
        %p203 = pneg %p132
        %p204 = pneg %p129
        %s205 = sand.u32 %s119, 1
        %s206 = scalar_lea.sflag [#allocation3], %s205
        %s207 = sand.u32 %s119, 1
        %s208 = smul.addr %s207, 8
        %s209 = scalar_lea.vmem [#allocation2], %s208
        %p210 = scmp.lt.s32.totalorder %s21, 1
        %s211 = scalar_select %p210, %s21, 1
        %p212 = scmp.lt.s32.totalorder %s22, 0
        %s213 = scalar_select %p212, %s22, 0
        %s214 = sadd.s32 %s213, %s211
        %s215 = smul.addr %s214, 8
        %s216 = scalar_lea.vmem %s0, %s215
        %p217 = scmp.lt.s32.totalorder %s21, 1
        %s218 = scalar_select %p217, %s21, 1
        %s219 = smul.addr %s218, 8
        %s220 = scalar_lea.vmem %s1, %s219
        %p221 = scmp.lt.s32.totalorder %s21, 1
        %s222 = scalar_select %p221, %s21, 1
        %s223 = smul.addr %s222, 8
        %s224 = scalar_lea.vmem %s2, %s223
        %v226 = vld [vmem:[%s216] sm:$0xff]
        %v227 = vld [vmem:[%s220] sm:$0x3f]
        %v228 = vld [vmem:[%s224] sm:$0x3f]
        %v229 = vmul.f32 %v226, %v226
        %vm230 = vcmask 261120
        %v231 = vsel %vm230, %v229, 0.0
        %232 = vadd.xlane.f32.xlu0 %v231
        %v233 = vpop.xlane.xlu0 %232
        %v234 = vmax.f32 %v233, 1e-16
        %v235 = vrsqrt.pop %v234
        %v236 = vmul.f32 %v226, %v235
        %v237 = vpack.c.bf16 %v236, %v236
        %v238 = vpack.c.bf16 %v227, %v227
        %v240 = vsel %vm230, %v238, 0
        %v243 = vsel %vm230, %v237, 0
        %245 = vmatprep.subr.bf16.mxu0 0
        %246 = vmatpush1.bf16.xpose.msra.mxu0 %v243
        %247 = vmatprep.subr.bf16.mxu0 0
        %248 = vmatpush1.bf16.xpose.msra.mxu0 0
        %249 = vmatprep.subr.bf16.mxu0 0
        %250 = vmatpush1.bf16.xpose.msra.mxu0 0
        %251 = vmatprep.subr.bf16.mxu0 0
        %252 = vmatpush1.bf16.xpose.msra.mxu0 0
        %253 = vmatprep.subr.bf16.mxu0 0
        %254 = vmatpush1.bf16.xpose.msra.mxu0 0
        %255 = vmatprep.subr.bf16.mxu0 0
        %256 = vmatpush1.bf16.xpose.msra.mxu0 0
        %257 = vmatprep.subr.bf16.mxu0 0
        %258 = vmatpush1.bf16.xpose.msra.mxu0 0
        %259 = vmatprep.subr.bf16.mxu0 0
        %260 = vmatpush1.bf16.xpose.msra.mxu0 0
        %261 = vmatprep.subr.bf16.mxu0 0
        %262 = vmatpush1.bf16.xpose.msra.mxu0 0
        %263 = vmatprep.subr.bf16.mxu0 0
        %264 = vmatpush1.bf16.xpose.msra.mxu0 0
        %265 = vmatprep.subr.bf16.mxu0 0
        %266 = vmatpush1.bf16.xpose.msra.mxu0 0
        %267 = vmatprep.subr.bf16.mxu0 0
        %268 = vmatpush1.bf16.xpose.msra.mxu0 0
        %269 = vmatprep.subr.bf16.mxu0 0
        %270 = vmatpush1.bf16.xpose.msra.mxu0 0
        %271 = vmatprep.subr.bf16.mxu0 0
        %272 = vmatpush1.bf16.xpose.msra.mxu0 0
        %273 = vmatprep.subr.bf16.mxu0 0
        %274 = vmatpush1.bf16.xpose.msra.mxu0 0
        %275 = vmatprep.subr.bf16.mxu0 0
        %276 = vmatpush1.bf16.xpose.msra.mxu0 0
        %277 = vmatprep.mubr.bf16.mxu0 0
        %278 = vmatmul.mubr.bf16.gmra.mrb[0].mxu0 %v240
        %v279 = vpop.f32.mrb[0].mxu0
        %v280 = vadd.f32 0.0, %v279
        %v281 = vpop.f32.mrb[0].mxu0
        %v282 = vpop.f32.mrb[0].mxu0
        %v283 = vpop.f32.mrb[0].mxu0
        %284 = vdwg.mxu0
        %286 = vset.pattern.permute.xlu0 0
        %287 = vperm.xlu0 %286, %v228
        %v288 = vpop.permute.xlu0 %287
        %v290 = vmul.f32 %v280, %v288
        %v291 = vmul.f32 %v290, 1.442695
        %v292 = vpow.pop %v291
        %vm293 = vcmask 62464
        %v294 = vsel %vm293, %v292, 0.0
        %v295 = vrot.slane %v294, 4
        %v296 = vadd.f32 %v294, %v295
        %v297 = vrot.slane %v296, 2
        %v298 = vadd.f32 %v296, %v297
        %v299 = vrot.slane %v298, 1
        %v300 = vadd.f32 %v298, %v299
        %v301 = vrcp.pop %v300
        %v302 = vmul.f32 %v292, %v301
        %303 = vxpose.xlu0.b32.start [1/16] %v302, 128
        %304 = vxpose.xlu0.b32.cont [2/16] 0.0, 128
        %305 = vxpose.xlu0.b32.cont [3/16] 0.0, 128
        %306 = vxpose.xlu0.b32.cont [4/16] 0.0, 128
        %307 = vxpose.xlu0.b32.cont [5/16] 0.0, 128
        %308 = vxpose.xlu0.b32.cont [6/16] 0.0, 128
        %309 = vxpose.xlu0.b32.cont [7/16] 0.0, 128
        %310 = vxpose.xlu0.b32.cont [8/16] 0.0, 128
        %311 = vxpose.xlu0.b32.cont [9/16] 0.0, 128
        %312 = vxpose.xlu0.b32.cont [10/16] 0.0, 128
        %313 = vxpose.xlu0.b32.cont [11/16] 0.0, 128
        %314 = vxpose.xlu0.b32.cont [12/16] 0.0, 128
        %315 = vxpose.xlu0.b32.cont [13/16] 0.0, 128
        %316 = vxpose.xlu0.b32.cont [14/16] 0.0, 128
        %317 = vxpose.xlu0.b32.cont [15/16] 0.0, 128
        %318 = vxpose.xlu0.b32.end [16/16] 0.0, 128
        %v319 = vpop.trf.xlu0
        %v320 = vpop.trf.xlu0
        %v321 = vpop.trf.xlu0
        %v322 = vpop.trf.xlu0
        %v323 = vpop.trf.xlu0
        %v324 = vpop.trf.xlu0
        %v325 = vpop.trf.xlu0
        %v326 = vpop.trf.xlu0
        %v327 = vpop.trf.xlu0
        %v328 = vpop.trf.xlu0
        %v329 = vpop.trf.xlu0
        %v330 = vpop.trf.xlu0
        %v331 = vpop.trf.xlu0
        %v332 = vpop.trf.xlu0
        %v333 = vpop.trf.xlu0
        %v334 = vpop.trf.xlu0
        %vm335 = vcmask 48128
        %v337 = vsel %vm335, %v319, 0
        %vm339 = vcmask 1045504
        %v341 = vsel %vm339, %v227, 0
        %343 = vmatprep.subr.mxu0 0.0
        %344 = vmatpush1.msra.mxu0 %v341
        %345 = vmatprep.subr.mxu0 0.0
        %346 = vmatpush1.msra.mxu0 0.0
        %347 = vmatprep.subr.mxu0 0.0
        %348 = vmatpush1.msra.mxu0 0.0
        %349 = vmatprep.subr.mxu0 0.0
        %350 = vmatpush1.msra.mxu0 0.0
        %351 = vmatprep.subr.mxu0 0.0
        %352 = vmatpush1.msra.mxu0 0.0
        %353 = vmatprep.subr.mxu0 0.0
        %354 = vmatpush1.msra.mxu0 0.0
        %355 = vmatprep.subr.mxu0 0.0
        %356 = vmatpush1.msra.mxu0 0.0
        %357 = vmatprep.subr.mxu0 0.0
        %358 = vmatpush1.msra.mxu0 0.0
        %359 = vmatprep.subr.mxu0 0.0
        %360 = vmatpush1.msra.mxu0 0.0
        %361 = vmatprep.subr.mxu0 0.0
        %362 = vmatpush1.msra.mxu0 0.0
        %363 = vmatprep.subr.mxu0 0.0
        %364 = vmatpush1.msra.mxu0 0.0
        %365 = vmatprep.subr.mxu0 0.0
        %366 = vmatpush1.msra.mxu0 0.0
        %367 = vmatprep.subr.mxu0 0.0
        %368 = vmatpush1.msra.mxu0 0.0
        %369 = vmatprep.subr.mxu0 0.0
        %370 = vmatpush1.msra.mxu0 0.0
        %371 = vmatprep.subr.mxu0 0.0
        %372 = vmatpush1.msra.mxu0 0.0
        %373 = vmatprep.subr.mxu0 0.0
        %374 = vmatpush1.msra.mxu0 0.0
        %375 = vmatprep.subr.mxu0 0.0
        %376 = vmatpush1.msra.mxu0 0.0
        %377 = vmatprep.subr.mxu0 0.0
        %378 = vmatpush1.msra.mxu0 0.0
        %379 = vmatprep.subr.mxu0 0.0
        %380 = vmatpush1.msra.mxu0 0.0
        %381 = vmatprep.subr.mxu0 0.0
        %382 = vmatpush1.msra.mxu0 0.0
        %383 = vmatprep.subr.mxu0 0.0
        %384 = vmatpush1.msra.mxu0 0.0
        %385 = vmatprep.subr.mxu0 0.0
        %386 = vmatpush1.msra.mxu0 0.0
        %387 = vmatprep.subr.mxu0 0.0
        %388 = vmatpush1.msra.mxu0 0.0
        %389 = vmatprep.subr.mxu0 0.0
        %390 = vmatpush1.msra.mxu0 0.0
        %391 = vmatprep.subr.mxu0 0.0
        %392 = vmatpush1.msra.mxu0 0.0
        %393 = vmatprep.subr.mxu0 0.0
        %394 = vmatpush1.msra.mxu0 0.0
        %395 = vmatprep.subr.mxu0 0.0
        %396 = vmatpush1.msra.mxu0 0.0
        %397 = vmatprep.subr.mxu0 0.0
        %398 = vmatpush1.msra.mxu0 0.0
        %399 = vmatprep.subr.mxu0 0.0
        %400 = vmatpush1.msra.mxu0 0.0
        %401 = vmatprep.subr.mxu0 0.0
        %402 = vmatpush1.msra.mxu0 0.0
        %403 = vmatprep.subr.mxu0 0.0
        %404 = vmatpush1.msra.mxu0 0.0
        %405 = vmatprep.subr.mxu0 0.0
        %406 = vmatpush1.msra.mxu0 0.0
        %407 = vmatprep.mubr.f32.mxu0 0.0
        %408 = vmatmul.mubr.f32.gmra.mrb[0].mxu0 %v337
        %v409 = vpop.f32.mrb[0].mxu0
        %v410 = vadd.f32 0.0, %v409
        %v411 = vpop.f32.mrb[0].mxu0
        %412 = vdwg.mxu0
        %413 = vst.msk [vmem:[%s209] sm:$0xff] %vm230, %v410
        %s414 = sand.u32 %s119, 1
        %s415 = scalar_lea.sflag [#allocation3], %s414
        %s416 = sand.u32 %s119, 1
        %s417 = smul.addr %s416, 8
        %s418 = scalar_lea.vmem [#allocation2], %s417
        // Predicated region
        $region33: #{tpu_custom_call.1} parent=31 // pred_check
          %p419 = pneg %p129
        $region34: #{tpu_custom_call.1} parent=31 // pred_check_branch
          %421 = sbr.rel (%p419) target = $region36
        $region35: #{tpu_custom_call.1} parent=31 // pred_region
          %s423 = ssub.s32 128, 128
          %424 = vsyncadd %s415, %s423
          %s425 = sadd.s32 %s22, %s21
          %s426 = smul.addr %s425, 128
          %s427 = scalar_lea.hbm %s3, %s426
          %s429 = sshll.u32 %s418, 4
          %s430 = int_to_ptr.vmem [resolvable:$true] %s429
          %432 = dma.vmem_to_hbm [thread:$0]  %s430, 128, %s427, %s415
        $region36: #{tpu_custom_call.1} parent=31 // pred_fallthru
          _
      $region32: #{tpu_custom_call.1} parent=5 // pred_fallthru
        _
      %p433 = scmp.le.s32.totalorder 2, %s12
      // Predicated region
      $region37: #{tpu_custom_call.1} parent=5 // pred_check
        %p434 = pneg %p433
      $region38: #{tpu_custom_call.1} parent=5 // pred_check_branch
        %436 = sbr.rel (%p434) target = $region40
      $region39: #{tpu_custom_call.1} parent=5 // pred_region
        %s437 = ssub.s32 %s12, 2
        // Predicated region
        $region41: #{tpu_custom_call.1} parent=39 // pred_check
          %p438 = pneg %p135
        $region42: #{tpu_custom_call.1} parent=39 // pred_check_branch
          %440 = sbr.rel (%p438) target = $region44
        $region43: #{tpu_custom_call.1} parent=39 // pred_region
          %s441 = sand.u32 %s120, 1
          %s442 = scalar_lea.sflag [#allocation3], %s441
          %s443 = sand.u32 %s120, 1
          %s444 = smul.addr %s443, 8
          %s445 = scalar_lea.vmem [#allocation2], %s444
          %446 = dma.done %s442, 128
        $region44: #{tpu_custom_call.1} parent=39 // pred_fallthru
          _
      $region40: #{tpu_custom_call.1} parent=5 // pred_fallthru
        _
    $region6: #{tpu_custom_call.1} parent=1 // loop_footer
      %s16 = sadd.s32 1, %s12
    $region7: #{tpu_custom_call.1} parent=1 // loop_footer_branch
      %11 = sbr.rel target = $region3
    $region8: #{tpu_custom_call.1} parent=1 // loop_exit
      _
    %447 = vsyncpa [#allocation3], 1
    %s448 = scalar_lea.sflag [#allocation3], 1
    %449 = vsyncpa %s448, 1

</llo_original>
